<compile_context>
chip_gen: v5e
topology: v5e:2x2
jax: 0.10.0
libtpu: 0.0.40
codegen_flags: <defaults>
</compile_context>

<pallas_src>
import jax
import jax.numpy as jnp
from jax.experimental import pallas as pl
from jax.experimental.pallas import tpu as pltpu

_LANES = 128


def _cdiv(a, b):
    return -(-a // b)


def _make_kernel(C, s_tile, n_s, hw_valid, hw_padded):
    """Build the per-(split, batch, spatial-tile) kernel body.

    Block views:
      logits_ref : (1, C, s_tile, 128)  model dtype (cast to f32 on load)
      tgt_ref    : (1, 1, s_tile, 128)  int8/int32 class labels
      inter_ref  : (1, 1, C, 128) f32   resident per-lane sum(softmax*onehot)
      total_ref  : (1, 1, C, 128) f32   resident per-lane sum(softmax+onehot)
    """
    has_pad = hw_padded != hw_valid

    def kernel(logits_ref, tgt_ref, inter_ref, total_ref):
        s = pl.program_id(2)

        @pl.when(s == 0)
        def _init():
            inter_ref[...] = jnp.zeros_like(inter_ref)
            total_ref[...] = jnp.zeros_like(total_ref)

        x = logits_ref[0].astype(jnp.float32)         # (C, s_tile, 128)
        t = tgt_ref[0, 0].astype(jnp.int32)           # (s_tile, 128)

        # Softmax over classes: the class axis is the leading axis, so the
        # max / sum over it are plain VPU ops across C vreg planes.
        m = jnp.max(x, axis=0, keepdims=True)         # (1, s_tile, 128)
        e = jnp.exp(x - m)
        z = jnp.sum(e, axis=0, keepdims=True)         # (1, s_tile, 128)
        # Approx reciprocal (EUP) + one Newton step (VPU) -> full f32 accuracy.
        r = pl.reciprocal(z, approx=True)
        r = r * (2.0 - z * r)
        p = e * r                                     # (C, s_tile, 128)

        # Float class-membership mask; no (B,C,H,W) one-hot in HBM.
        chan = jax.lax.broadcasted_iota(jnp.int32, p.shape, 0)
        eqf = (chan == t[None]).astype(jnp.float32)   # (C, s_tile, 128)

        if has_pad:
            # Mask padded pixels out of both the softmax sum and the count.
            row0 = (pl.program_id(0) * n_s + s) * s_tile
            sub = jax.lax.broadcasted_iota(jnp.int32, (s_tile, _LANES), 0)
            lane = jax.lax.broadcasted_iota(jnp.int32, (s_tile, _LANES), 1)
            pix = (row0 + sub) * _LANES + lane
            validf = (pix < hw_valid).astype(jnp.float32)
            p = p * validf[None]
            eqf = eqf * validf[None]

        # Reduce only the sublane axis per step; keep lane-dense (C, 128)
        # partial sums resident in the output block.
        inter_ref[0, 0] += jnp.sum(p * eqf, axis=1)   # (C, 128)
        total_ref[0, 0] += jnp.sum(p + eqf, axis=1)   # (C, 128)

    return kernel


def contrastive_loss(outputs, feature, targets, n_class):
    """Pallas equivalent of Cntrastive_Loss(n_class)(outputs, feature, targets)."""
    del feature  # unused, as in the reference forward()
    B, C, H, W = outputs.shape
    assert C == n_class, "channel dim of outputs must equal n_class"
    HW = H * W
    s_raw = _cdiv(HW, _LANES)
    itemsize = jnp.dtype(outputs.dtype).itemsize

    # --- generation-aware VMEM budget ---------------------------------
    try:
        vmem_cap = int(pltpu.get_tpu_info().vmem_capacity_bytes)
    except Exception:
        vmem_cap = 64 * 1024 * 1024  # conservative (v7x per-TC)
    vmem_limit = max(32 * 1024 * 1024,
                     min(vmem_cap - 16 * 1024 * 1024, 96 * 1024 * 1024))

    # --- byte-budgeted spatial tile (multiple of 32 sublanes) ----------
    target_block_bytes = min(4 * 1024 * 1024, vmem_limit // 16)
    s_budget = (target_block_bytes // (C * _LANES * itemsize)) // 32 * 32
    s_budget = max(32, min(s_budget, 4096))

    if s_raw <= s_budget:
        # Whole spatial extent fits one block per batch image.
        split, n_s, s_tile = 1, 1, s_raw
        s_pad = s_raw
    else:
        split = 2  # split the spatial reduction so both v7x TCs work even at B==1
        n_tiles = _cdiv(_cdiv(s_raw, s_budget), split) * split
        s_tile = _cdiv(_cdiv(s_raw, n_tiles), 32) * 32
        s_pad = n_tiles * s_tile
        n_s = n_tiles // split

    hw_pad = s_pad * _LANES

    # --- wrapper-side layout: class axis leading, 128 lanes ------------
    tgt_dtype = jnp.int8 if n_class <= 127 else jnp.int32
    logits = outputs.reshape(B, C, HW)                  # keep model dtype
    tgt = targets.reshape(B, 1, HW).astype(tgt_dtype)
    if hw_pad != HW:
        logits = jnp.pad(logits, ((0, 0), (0, 0), (0, hw_pad - HW)))
        tgt = jnp.pad(tgt, ((0, 0), (0, 0), (0, hw_pad - HW)))
    logits = logits.reshape(B, C, s_pad, _LANES)
    tgt = tgt.reshape(B, 1, s_pad, _LANES)

    kernel = _make_kernel(C, s_tile, n_s, HW, hw_pad)

    inter, total = pl.pallas_call(
        kernel,
        out_shape=(
            jax.ShapeDtypeStruct((split, B, C, _LANES), jnp.float32),
            jax.ShapeDtypeStruct((split, B, C, _LANES), jnp.float32),
        ),
        grid_spec=pltpu.PrefetchScalarGridSpec(
            num_scalar_prefetch=0,
            grid=(split, B, n_s),
            in_specs=[
                pl.BlockSpec((1, C, s_tile, _LANES),
                             lambda h, b, s: (b, 0, h * n_s + s, 0)),
                pl.BlockSpec((1, 1, s_tile, _LANES),
                             lambda h, b, s: (b, 0, h * n_s + s, 0)),
            ],
            out_specs=[
                pl.BlockSpec((1, 1, C, _LANES), lambda h, b, s: (h, b, 0, 0)),
                pl.BlockSpec((1, 1, C, _LANES), lambda h, b, s: (h, b, 0, 0)),
            ],
        ),
        compiler_params=pltpu.CompilerParams(
            dimension_semantics=("parallel", "parallel", "arbitrary"),
            vmem_limit_bytes=vmem_limit,
        ),
    )(logits, tgt)

    # Tiny JAX epilogue: lane + split reductions, epsilon ratio, mean.
    inter = jnp.sum(inter, axis=(0, 3))   # (B, C)
    total = jnp.sum(total, axis=(0, 3))   # (B, C)
    union = total - inter
    loss = (inter + 1e-24) / (union + 1e-24)
    return 1.0 - jnp.mean(loss)


def _reference_loss(outputs, targets, n_class):
    # Pure-JAX reference mirroring the PyTorch forward, for validation.
    p = jax.nn.softmax(outputs.astype(jnp.float32), axis=1)
    oh = jax.nn.one_hot(targets, n_class, axis=1, dtype=jnp.float32)
    inter = jnp.sum(p * oh, axis=(2, 3))
    total = jnp.sum(p + oh, axis=(2, 3))
    union = total - inter
    loss = (inter + 1e-24) / (union + 1e-24)
    return 1.0 - jnp.mean(loss)


if __name__ == "__main__":
    B, C, H, W = 2, 4, 16, 16
    FEAT_C = 32  # feature channels (unused by the loss)

    key = jax.random.PRNGKey(0)
    k1, k2, k3 = jax.random.split(key, 3)
    outputs = jax.random.normal(k1, (B, C, H, W), dtype=jnp.float32)
    feature = jax.random.normal(k2, (B, FEAT_C, H, W), dtype=jnp.float32)
    targets = jax.random.randint(k3, (B, H, W), 0, C, dtype=jnp.int32)

    loss = contrastive_loss(outputs, feature, targets, n_class=C)
    loss = jax.block_until_ready(loss)

    ref = _reference_loss(outputs, targets, C)
    assert jnp.allclose(loss, ref, atol=1e-5, rtol=1e-5), (loss, ref)

    print("KERNEL_OK")
</pallas_src>

<mosaic_0001>
module attributes {stable_mosaic.version = 11 : i64} {
  func.func @kernel(%arg0: i32, %arg1: i32, %arg2: i32, %arg3: memref<1x4x2x128xf32, #tpu.memory_space<vmem>>, %arg4: memref<1x1x2x128xi8, #tpu.memory_space<vmem>>, %arg5: memref<1x1x4x128xf32, #tpu.memory_space<vmem>>, %arg6: memref<1x1x4x128xf32, #tpu.memory_space<vmem>>) attributes {dimension_semantics = [#tpu.dimension_semantics<parallel>, #tpu.dimension_semantics<parallel>, #tpu.dimension_semantics<arbitrary>], iteration_bounds = array<i64: 1, 2, 1>, scalar_prefetch = 0 : i64, scratch_operands = 0 : i64, tpu.core_type = #tpu.core_type<tc>, window_params = [{transform_indices = @transform_0, window_bounds = array<i64: 1, 4, 2, 128>}, {transform_indices = @transform_1, window_bounds = array<i64: 1, 1, 2, 128>}, {transform_indices = @transform_2, window_bounds = array<i64: 1, 1, 4, 128>}, {transform_indices = @transform_3, window_bounds = array<i64: 1, 1, 4, 128>}]} {
    %c0_i32 = arith.constant 0 : i32
    %0 = arith.cmpi eq, %arg2, %c0_i32 : i32
    %1 = arith.extui %0 : i1 to i32
    %c0_i32_0 = arith.constant 0 : i32
    %2 = arith.cmpi ne, %1, %c0_i32_0 : i32
    scf.if %2 {
      %cst_28 = arith.constant 0.000000e+00 : f32
      %44 = vector.broadcast %cst_28 : f32 to vector<1x1x4x128xf32>
      %c0_29 = arith.constant 0 : index
      %c0_30 = arith.constant 0 : index
      %c0_31 = arith.constant 0 : index
      %c0_32 = arith.constant 0 : index
      %45 = vector.load %arg5[%c0_29, %c0_30, %c0_31, %c0_32] : memref<1x1x4x128xf32, #tpu.memory_space<vmem>>, vector<1x1x4x128xf32>
      tpu.vector_store %arg5[%c0_29, %c0_30, %c0_31, %c0_32], %44 {strides = array<i32>} : memref<1x1x4x128xf32, #tpu.memory_space<vmem>>, vector<1x1x4x128xf32>,
      %cst_33 = arith.constant 0.000000e+00 : f32
      %46 = vector.broadcast %cst_33 : f32 to vector<1x1x4x128xf32>
      %c0_34 = arith.constant 0 : index
      %c0_35 = arith.constant 0 : index
      %c0_36 = arith.constant 0 : index
      %c0_37 = arith.constant 0 : index
      %47 = vector.load %arg6[%c0_34, %c0_35, %c0_36, %c0_37] : memref<1x1x4x128xf32, #tpu.memory_space<vmem>>, vector<1x1x4x128xf32>
      tpu.vector_store %arg6[%c0_34, %c0_35, %c0_36, %c0_37], %46 {strides = array<i32>} : memref<1x1x4x128xf32, #tpu.memory_space<vmem>>, vector<1x1x4x128xf32>,
    } else {
    }
    %c0 = arith.constant 0 : index
    %c0_1 = arith.constant 0 : index
    %c0_2 = arith.constant 0 : index
    %c0_3 = arith.constant 0 : index
    %3 = vector.load %arg3[%c0, %c0_1, %c0_2, %c0_3] : memref<1x4x2x128xf32, #tpu.memory_space<vmem>>, vector<1x4x2x128xf32>
    %4 = vector.shape_cast %3 : vector<1x4x2x128xf32> to vector<4x2x128xf32>
    %c0_4 = arith.constant 0 : index
    %c0_5 = arith.constant 0 : index
    %c0_6 = arith.constant 0 : index
    %c0_7 = arith.constant 0 : index
    %5 = vector.load %arg4[%c0_4, %c0_5, %c0_6, %c0_7] : memref<1x1x2x128xi8, #tpu.memory_space<vmem>>, vector<1x1x2x128xi8>
    %6 = vector.shape_cast %5 : vector<1x1x2x128xi8> to vector<2x128xi8>
    %7 = arith.extsi %6 : vector<2x128xi8> to vector<2x128xi32>
    %cst = arith.constant dense<0xFF800000> : vector<2x128xf32>
    %8 = vector.multi_reduction <maximumf>, %4, %cst [0] : vector<4x2x128xf32> to vector<2x128xf32>
    %9 = vector.shape_cast %8 : vector<2x128xf32> to vector<1x2x128xf32>
    %10 = vector.broadcast %9 : vector<1x2x128xf32> to vector<4x2x128xf32>
    %11 = arith.subf %4, %10 : vector<4x2x128xf32>
    %12 = math.exp %11 : vector<4x2x128xf32>
    %cst_8 = arith.constant dense<0.000000e+00> : vector<2x128xf32>
    %13 = vector.multi_reduction <add>, %12, %cst_8 [0] : vector<4x2x128xf32> to vector<2x128xf32>
    %14 = vector.shape_cast %13 : vector<2x128xf32> to vector<1x2x128xf32>
    %15 = tpu.reciprocal %14 {approx = true} : vector<1x2x128xf32> -> vector<1x2x128xf32>
    %16 = arith.mulf %14, %15 : vector<1x2x128xf32>
    %cst_9 = arith.constant 2.000000e+00 : f32
    %17 = vector.broadcast %cst_9 : f32 to vector<1x2x128xf32>
    %18 = arith.subf %17, %16 : vector<1x2x128xf32>
    %19 = arith.mulf %15, %18 : vector<1x2x128xf32>
    %20 = vector.broadcast %19 : vector<1x2x128xf32> to vector<4x2x128xf32>
    %21 = arith.mulf %12, %20 : vector<4x2x128xf32>
    %22 = tpu.iota {dimensions = array<i32: 0>} : vector<4x2x128xi32>
    %23 = vector.shape_cast %7 : vector<2x128xi32> to vector<1x2x128xi32>
    %24 = vector.broadcast %23 : vector<1x2x128xi32> to vector<4x2x128xi32>
    %25 = arith.cmpi eq, %22, %24 : vector<4x2x128xi32>
    %26 = arith.extui %25 : vector<4x2x128xi1> to vector<4x2x128xi32>
    %27 = arith.sitofp %26 : vector<4x2x128xi32> to vector<4x2x128xf32>
    %c0_10 = arith.constant 0 : index
    %c0_11 = arith.constant 0 : index
    %c0_12 = arith.constant 0 : index
    %c0_13 = arith.constant 0 : index
    %28 = vector.load %arg5[%c0_10, %c0_11, %c0_12, %c0_13] : memref<1x1x4x128xf32, #tpu.memory_space<vmem>>, vector<1x1x4x128xf32>
    %29 = vector.shape_cast %28 : vector<1x1x4x128xf32> to vector<4x128xf32>
    %30 = arith.mulf %21, %27 : vector<4x2x128xf32>
    %cst_14 = arith.constant dense<0.000000e+00> : vector<4x128xf32>
    %31 = vector.multi_reduction <add>, %30, %cst_14 [1] : vector<4x2x128xf32> to vector<4x128xf32>
    %32 = arith.addf %29, %31 : vector<4x128xf32>
    %c0_15 = arith.constant 0 : index
    %c0_16 = arith.constant 0 : index
    %c0_17 = arith.constant 0 : index
    %c0_18 = arith.constant 0 : index
    %33 = vector.load %arg5[%c0_15, %c0_16, %c0_17, %c0_18] : memref<1x1x4x128xf32, #tpu.memory_space<vmem>>, vector<1x1x4x128xf32>
    %34 = vector.shape_cast %33 : vector<1x1x4x128xf32> to vector<4x128xf32>
    %35 = vector.shape_cast %32 : vector<4x128xf32> to vector<1x1x4x128xf32>
    tpu.vector_store %arg5[%c0_15, %c0_16, %c0_17, %c0_18], %35 {strides = array<i32>} : memref<1x1x4x128xf32, #tpu.memory_space<vmem>>, vector<1x1x4x128xf32>,
    %c0_19 = arith.constant 0 : index
    %c0_20 = arith.constant 0 : index
    %c0_21 = arith.constant 0 : index
    %c0_22 = arith.constant 0 : index
    %36 = vector.load %arg6[%c0_19, %c0_20, %c0_21, %c0_22] : memref<1x1x4x128xf32, #tpu.memory_space<vmem>>, vector<1x1x4x128xf32>
    %37 = vector.shape_cast %36 : vector<1x1x4x128xf32> to vector<4x128xf32>
    %38 = arith.addf %21, %27 : vector<4x2x128xf32>
    %cst_23 = arith.constant dense<0.000000e+00> : vector<4x128xf32>
    %39 = vector.multi_reduction <add>, %38, %cst_23 [1] : vector<4x2x128xf32> to vector<4x128xf32>
    %40 = arith.addf %37, %39 : vector<4x128xf32>
    %c0_24 = arith.constant 0 : index
    %c0_25 = arith.constant 0 : index
    %c0_26 = arith.constant 0 : index
    %c0_27 = arith.constant 0 : index
    %41 = vector.load %arg6[%c0_24, %c0_25, %c0_26, %c0_27] : memref<1x1x4x128xf32, #tpu.memory_space<vmem>>, vector<1x1x4x128xf32>
    %42 = vector.shape_cast %41 : vector<1x1x4x128xf32> to vector<4x128xf32>
    %43 = vector.shape_cast %40 : vector<4x128xf32> to vector<1x1x4x128xf32>
    tpu.vector_store %arg6[%c0_24, %c0_25, %c0_26, %c0_27], %43 {strides = array<i32>} : memref<1x1x4x128xf32, #tpu.memory_space<vmem>>, vector<1x1x4x128xf32>,
    return
  }
  func.func @transform_0(%arg0: i32, %arg1: i32, %arg2: i32) -> (i32, i32, i32, i32) {
    %c1_i32 = arith.constant 1 : i32
    %0 = arith.muli %arg0, %c1_i32 : i32
    %1 = arith.addi %0, %arg2 : i32
    %c0_i32 = arith.constant 0 : i32
    %c0_i32_0 = arith.constant 0 : i32
    %c0_i32_1 = arith.constant 0 : i32
    return %arg1, %c0_i32, %1, %c0_i32_0 : i32, i32, i32, i32
  }
  func.func @transform_1(%arg0: i32, %arg1: i32, %arg2: i32) -> (i32, i32, i32, i32) {
    %c1_i32 = arith.constant 1 : i32
    %0 = arith.muli %arg0, %c1_i32 : i32
    %1 = arith.addi %0, %arg2 : i32
    %c0_i32 = arith.constant 0 : i32
    %c0_i32_0 = arith.constant 0 : i32
    %c0_i32_1 = arith.constant 0 : i32
    return %arg1, %c0_i32, %1, %c0_i32_0 : i32, i32, i32, i32
  }
  func.func @transform_2(%arg0: i32, %arg1: i32, %arg2: i32) -> (i32, i32, i32, i32) {
    %c0_i32 = arith.constant 0 : i32
    %c0_i32_0 = arith.constant 0 : i32
    %c0_i32_1 = arith.constant 0 : i32
    return %arg0, %arg1, %c0_i32, %c0_i32_0 : i32, i32, i32, i32
  }
  func.func @transform_3(%arg0: i32, %arg1: i32, %arg2: i32) -> (i32, i32, i32, i32) {
    %c0_i32 = arith.constant 0 : i32
    %c0_i32_0 = arith.constant 0 : i32
    %c0_i32_1 = arith.constant 0 : i32
    return %arg0, %arg1, %c0_i32, %c0_i32_0 : i32, i32, i32, i32
  }
}

</mosaic_0001>

<llo_original>
// kernel: tpu_custom_call.1
$region0: #{tpu_custom_call.1}
  #allocation0 [shape = 'u32[]', space=smem, size = 0x4, offset = 0x4, fixed_abs, tag = 'smem constant byte address 0x4 - core index']
  #allocation1 [shape = 'u32[72,128]{1,0:T(1,128)}', space=vmem, size = 0x9000, scoped, tag = 'internal scratch']
  %s0 = inlined_call_operand.hbm [shape: f32[2,4,2,128], index: 0, kind: input, shape index: {}]
  %s1 = inlined_call_operand.hbm [shape: s8[2,1,2,128], index: 1, kind: input, shape index: {}]
  %s2 = inlined_call_operand.hbm [shape: f32[1,2,4,128], index: 2, kind: output, shape index: {0}]
  %s3 = inlined_call_operand.hbm [shape: f32[1,2,4,128], index: 3, kind: output, shape index: {1}]
  %4 = xla_tuple %s2, %s3
  %s5 = sld [smem:[#allocation0]]
  $region61: #{tpu_custom_call.1} parent=0
    _
  %s7 = ssub.s32 1, %s5
  %s8 = scalar_select 0, %s7, %s5
  $region1: #{tpu_custom_call.1} parent=0
    #allocation2 [shape = 'u8[8192]{0}', space=vmem, size = 0x2000, scoped, tag = 'input window, operand 0']
    #allocation3 [shape = 's32[2]{0}', space=sflag, size = 0x8, scoped, tag = 'scoped memory for tpu_custom_call.1']
    #allocation4 [shape = 's32[2]{0}', space=sflag, size = 0x8, scoped, tag = 'scoped memory for tpu_custom_call.1']
    #allocation5 [shape = 'u8[1024]{0}', space=vmem, size = 0x400, scoped, tag = 'input window, operand 1']
    #allocation6 [shape = 's32[2]{0}', space=sflag, size = 0x8, scoped, tag = 'scoped memory for tpu_custom_call.1']
    #allocation7 [shape = 'u8[4096]{0}', space=vmem, size = 0x1000, scoped, tag = 'output window, operand 0']
    #allocation8 [shape = 'u8[4096]{0}', space=vmem, size = 0x1000, scoped, tag = 'output window, operand 1']
    #allocation9 [shape = 's32[2]{0}', space=sflag, size = 0x8, scoped, tag = 'scoped memory for tpu_custom_call.1']
    %9 = vsyncpa [#allocation3], 0
    %s10 = scalar_lea.sflag [#allocation3], 1
    %11 = vsyncpa %s10, 0
    %12 = vsyncpa [#allocation6], 0
    %s13 = scalar_lea.sflag [#allocation6], 1
    %14 = vsyncpa %s13, 0
    %15 = vsyncpa [#allocation4], 0
    %s16 = scalar_lea.sflag [#allocation4], 1
    %17 = vsyncpa %s16, 0
    %18 = vsyncpa [#allocation9], 0
    %s19 = scalar_lea.sflag [#allocation9], 1
    %20 = vsyncpa %s19, 0
    loop: start=0, step=1, limit=4
    $region2: #{tpu_custom_call.1} parent=1 // loop_pre_header
      _
    $region3: #{tpu_custom_call.1} parent=1 // loop_header
      %s22 = sphi 0, %s26
      %p23 = scmp.ge.s32.totalorder %s22, 4
      %s29 = sphi 0, %s48
      %s30 = sphi 0, %s44
      %s31 = sphi 0, %s40
      %s32 = sphi 0, %s29
      %s33 = sphi 0, %s30
      %s34 = sphi 0, %s31
      %s35 = sphi 0, %s32
      %s36 = sphi 0, %s33
      %s37 = sphi 0, %s34
      %s55 = sphi 0, %s57
      %s58 = sphi 0, %s55
      %s59 = sphi 0, %s58
      %s75 = sphi 0, %s59
      %s85 = sphi 0, %s87
      %s88 = sphi 0, %s85
      %s89 = sphi 0, %s88
      %s105 = sphi 0, %s89
      %s113 = sphi 0, %s115
      %s116 = sphi 0, %s113
      %s117 = sphi 0, %s116
      %s133 = sphi 0, %s117
      %s141 = sphi 0, %s143
      %s144 = sphi 0, %s141
      %s145 = sphi 0, %s144
      %s161 = sphi 0, %s145
    $region4: #{tpu_custom_call.1} parent=1 // loop_header_branch
      %25 = sbr.rel (%p23) target = $region8
    $region5: #{tpu_custom_call.1} parent=1 // loop_body
      %s27 = ssub.s32 %s22, 1
      %s28 = ssub.s32 %s22, 2
      %s38 = sadd.s32 1, %s31
      %p39 = scmp.ge.s32.totalorder %s38, 1
      %s40 = scalar_select %p39, 0, %s38
      %s41 = sadd.s32 1, %s30
      %s42 = scalar_select %p39, %s41, %s30
      %p43 = scmp.ge.s32.totalorder %s42, 2
      %s44 = scalar_select %p43, 0, %s42
      %s45 = sadd.s32 1, %s29
      %s46 = scalar_select %p43, %s45, %s29
      %p47 = scmp.ge.s32.totalorder %s46, 1
      %s48 = scalar_select %p47, 0, %s46
      %s49 = sadd.s32 %s29, %s31
      %s50 = sadd.s32 %s48, %s40
      %s51 = ssub.s32 %s30, %s44
      %s52 = ssub.s32 %s49, %s50
      %s53 = sor.u32 %s51, %s52
      %p54 = scmp.eq.s32.totalorder %s53, 0
      %s56 = sadd.s32 %s55, 1
      %s57 = scalar_select %p54, %s55, %s56
      %p60 = pneg %p54
      %p61 = scmp.eq.s32.totalorder %s22, 1
      %p62 = por %p60, %p61
      %p63 = scmp.ne.s32.totalorder %s55, %s58
      %p64 = scmp.eq.s32.totalorder %s22, 0
      %p65 = por %p63, %p64
      %p66 = scmp.ne.s32.totalorder %s55, %s58
      %p67 = scmp.eq.s32.totalorder %s27, 1
      %p68 = por %p66, %p67
      %p69 = scmp.ne.s32.totalorder %s58, %s59
      %p70 = scmp.eq.s32.totalorder %s27, 0
      %p71 = por %p69, %p70
      %p72 = scmp.ne.s32.totalorder %s58, %s59
      %p73 = scmp.eq.s32.totalorder %s28, 1
      %p74 = por %p72, %p73
      %p76 = scmp.ne.s32.totalorder %s59, %s75
      %p77 = scmp.eq.s32.totalorder %s28, 0
      %p78 = por %p76, %p77
      %s79 = sadd.s32 %s29, %s31
      %s80 = sadd.s32 %s48, %s40
      %s81 = ssub.s32 %s30, %s44
      %s82 = ssub.s32 %s79, %s80
      %s83 = sor.u32 %s81, %s82
      %p84 = scmp.eq.s32.totalorder %s83, 0
      %s86 = sadd.s32 %s85, 1
      %s87 = scalar_select %p84, %s85, %s86
      %p90 = pneg %p84
      %p91 = scmp.eq.s32.totalorder %s22, 1
      %p92 = por %p90, %p91
      %p93 = scmp.ne.s32.totalorder %s85, %s88
      %p94 = scmp.eq.s32.totalorder %s22, 0
      %p95 = por %p93, %p94
      %p96 = scmp.ne.s32.totalorder %s85, %s88
      %p97 = scmp.eq.s32.totalorder %s27, 1
      %p98 = por %p96, %p97
      %p99 = scmp.ne.s32.totalorder %s88, %s89
      %p100 = scmp.eq.s32.totalorder %s27, 0
      %p101 = por %p99, %p100
      %p102 = scmp.ne.s32.totalorder %s88, %s89
      %p103 = scmp.eq.s32.totalorder %s28, 1
      %p104 = por %p102, %p103
      %p106 = scmp.ne.s32.totalorder %s89, %s105
      %p107 = scmp.eq.s32.totalorder %s28, 0
      %p108 = por %p106, %p107
      %s109 = ssub.s32 %s29, %s48
      %s110 = ssub.s32 %s30, %s44
      %s111 = sor.u32 %s109, %s110
      %p112 = scmp.eq.s32.totalorder %s111, 0
      %s114 = sadd.s32 %s113, 1
      %s115 = scalar_select %p112, %s113, %s114
      %p118 = pneg %p112
      %p119 = scmp.eq.s32.totalorder %s22, 1
      %p120 = por %p118, %p119
      %p121 = scmp.ne.s32.totalorder %s113, %s116
      %p122 = scmp.eq.s32.totalorder %s22, 0
      %p123 = por %p121, %p122
      %p124 = scmp.ne.s32.totalorder %s113, %s116
      %p125 = scmp.eq.s32.totalorder %s27, 1
      %p126 = por %p124, %p125
      %p127 = scmp.ne.s32.totalorder %s116, %s117
      %p128 = scmp.eq.s32.totalorder %s27, 0
      %p129 = por %p127, %p128
      %p130 = scmp.ne.s32.totalorder %s116, %s117
      %p131 = scmp.eq.s32.totalorder %s28, 1
      %p132 = por %p130, %p131
      %p134 = scmp.ne.s32.totalorder %s117, %s133
      %p135 = scmp.eq.s32.totalorder %s28, 0
      %p136 = por %p134, %p135
      %s137 = ssub.s32 %s29, %s48
      %s138 = ssub.s32 %s30, %s44
      %s139 = sor.u32 %s137, %s138
      %p140 = scmp.eq.s32.totalorder %s139, 0
      %s142 = sadd.s32 %s141, 1
      %s143 = scalar_select %p140, %s141, %s142
      %p146 = pneg %p140
      %p147 = scmp.eq.s32.totalorder %s22, 1
      %p148 = por %p146, %p147
      %p149 = scmp.ne.s32.totalorder %s141, %s144
      %p150 = scmp.eq.s32.totalorder %s22, 0
      %p151 = por %p149, %p150
      %p152 = scmp.ne.s32.totalorder %s141, %s144
      %p153 = scmp.eq.s32.totalorder %s27, 1
      %p154 = por %p152, %p153
      %p155 = scmp.ne.s32.totalorder %s144, %s145
      %p156 = scmp.eq.s32.totalorder %s27, 0
      %p157 = por %p155, %p156
      %p158 = scmp.ne.s32.totalorder %s144, %s145
      %p159 = scmp.eq.s32.totalorder %s28, 1
      %p160 = por %p158, %p159
      %p162 = scmp.ne.s32.totalorder %s145, %s161
      %p163 = scmp.eq.s32.totalorder %s28, 0
      %p164 = por %p162, %p163
      %p165 = scmp.le.s32.totalorder 1, %s22
      %p166 = scmp.lt.s32.totalorder %s22, 3
      %p167 = pnand %p165, %p166
      %p168 = pneg %p167
      // Predicated region
      $region9: #{tpu_custom_call.1} parent=5 // pred_check
        _
      $region10: #{tpu_custom_call.1} parent=5 // pred_check_branch
        %170 = sbr.rel (%p167) target = $region12
      $region11: #{tpu_custom_call.1} parent=5 // pred_region
        %s171 = ssub.s32 %s22, 1
      $region12: #{tpu_custom_call.1} parent=5 // pred_fallthru
        _
      %p172 = scmp.lt.s32.totalorder %s22, 2
      // Predicated region
      $region13: #{tpu_custom_call.1} parent=5 // pred_check
        %p173 = pneg %p172
      $region14: #{tpu_custom_call.1} parent=5 // pred_check_branch
        %175 = sbr.rel (%p173) target = $region16
      $region15: #{tpu_custom_call.1} parent=5 // pred_region
        // Predicated region
        $region17: #{tpu_custom_call.1} parent=15 // pred_check
          %p176 = pneg %p65
        $region18: #{tpu_custom_call.1} parent=15 // pred_check_branch
          %178 = sbr.rel (%p176) target = $region20
        $region19: #{tpu_custom_call.1} parent=15 // pred_region
          %s179 = sand.u32 %s55, 1
          %s180 = scalar_lea.sflag [#allocation3], %s179
          %s181 = sand.u32 %s55, 1
          %s182 = smul.addr %s181, 8
          %s183 = scalar_lea.vmem [#allocation2], %s182
          %s184 = sadd.s32 %s29, %s31
          %186 = vsyncadd %s180, 0
          %s187 = smul.addr %s30, 4
          %s188 = sadd.s32 %s184, %s187
          %s189 = smul.addr %s188, 2
          %s190 = scalar_lea.hbm %s0, %s189
          %s191 = sshll.u32 %s190, 4
          %s192 = int_to_ptr.hbm [resolvable:$true] %s191
          %s193 = sshll.u32 %s183, 4
          %s194 = int_to_ptr.vmem [resolvable:$true] %s193
          %199 = dma.hbm_to_vmem [thread:$0]  %s192, 128, %s194, %s180, 32, 32, 2
        $region20: #{tpu_custom_call.1} parent=15 // pred_fallthru
          _
        // Predicated region
        $region21: #{tpu_custom_call.1} parent=15 // pred_check
          %p200 = pneg %p95
        $region22: #{tpu_custom_call.1} parent=15 // pred_check_branch
          %202 = sbr.rel (%p200) target = $region24
        $region23: #{tpu_custom_call.1} parent=15 // pred_region
          %s203 = sand.u32 %s85, 1
          %s204 = scalar_lea.sflag [#allocation6], %s203
          %s205 = sand.u32 %s85, 1
          %s206 = scalar_lea.vmem [#allocation5], %s205
          %s207 = sadd.s32 %s29, %s31
          %209 = vsyncadd %s204, 0
          %s210 = sadd.s32 %s207, %s30
          %s211 = scalar_lea.hbm %s1, %s210
          %s213 = sshll.u32 %s211, 4
          %s214 = int_to_ptr.hbm [resolvable:$true] %s213
          %s215 = sshll.u32 %s206, 4
          %s216 = int_to_ptr.vmem [resolvable:$true] %s215
          %218 = dma.hbm_to_vmem [thread:$0]  %s214, 16, %s216, %s204
        $region24: #{tpu_custom_call.1} parent=15 // pred_fallthru
          _
      $region16: #{tpu_custom_call.1} parent=5 // pred_fallthru
        _
      %p219 = scmp.le.s32.totalorder 1, %s22
      %p220 = scmp.lt.s32.totalorder %s22, 3
      %p221 = pnand %p219, %p220
      %p222 = pneg %p221
      // Predicated region
      $region25: #{tpu_custom_call.1} parent=5 // pred_check
        _
      $region26: #{tpu_custom_call.1} parent=5 // pred_check_branch
        %224 = sbr.rel (%p221) target = $region28
      $region27: #{tpu_custom_call.1} parent=5 // pred_region
        %s225 = ssub.s32 %s22, 1
        %s226 = sand.u32 %s58, 1
        %s227 = scalar_lea.sflag [#allocation3], %s226
        %s228 = sand.u32 %s58, 1
        %s229 = smul.addr %s228, 8
        %s230 = scalar_lea.vmem [#allocation2], %s229
        // Predicated region
        $region29: #{tpu_custom_call.1} parent=27 // pred_check
          %p231 = pneg %p71
        $region30: #{tpu_custom_call.1} parent=27 // pred_check_branch
          %233 = sbr.rel (%p231) target = $region32
        $region31: #{tpu_custom_call.1} parent=27 // pred_region
          %235 = dma.done %s227, 128
        $region32: #{tpu_custom_call.1} parent=27 // pred_fallthru
          _
        %s236 = sand.u32 %s88, 1
        %s237 = scalar_lea.sflag [#allocation6], %s236
        %s238 = sand.u32 %s88, 1
        %s239 = scalar_lea.vmem [#allocation5], %s238
        // Predicated region
        $region33: #{tpu_custom_call.1} parent=27 // pred_check
          %p240 = pneg %p101
        $region34: #{tpu_custom_call.1} parent=27 // pred_check_branch
          %242 = sbr.rel (%p240) target = $region36
        $region35: #{tpu_custom_call.1} parent=27 // pred_region
          %244 = dma.done %s237, 16
        $region36: #{tpu_custom_call.1} parent=27 // pred_fallthru
          _
        %s245 = sand.u32 %s58, 1
        %s246 = scalar_lea.sflag [#allocation3], %s245
        %s247 = sand.u32 %s58, 1
        %s248 = smul.addr %s247, 8
        %s249 = scalar_lea.vmem [#allocation2], %s248
        %p250 = pneg %p71
        %p251 = pneg %p68
        %s252 = sand.u32 %s88, 1
        %s253 = scalar_lea.sflag [#allocation6], %s252
        %s254 = sand.u32 %s88, 1
        %s255 = scalar_lea.vmem [#allocation5], %s254
        %p256 = pneg %p101
        %p257 = pneg %p98
        %p258 = pneg %p129
        %p259 = pneg %p126
        %s260 = sand.u32 %s116, 1
        %s261 = scalar_lea.sflag [#allocation4], %s260
        %s262 = sand.u32 %s116, 1
        %s263 = smul.addr %s262, 4
        %s264 = scalar_lea.vmem [#allocation7], %s263
        %p265 = pneg %p157
        %p266 = pneg %p154
        %s267 = sand.u32 %s144, 1
        %s268 = scalar_lea.sflag [#allocation9], %s267
        %s269 = sand.u32 %s144, 1
        %s270 = smul.addr %s269, 4
        %s271 = scalar_lea.vmem [#allocation8], %s270
        %s272 = sadd.s32 %s32, %s34
        %s273 = sadd.s32 %s32, %s34
        %p274 = scmp.eq.s32.totalorder %s34, 0
        // Predicated region
        $region37: #{tpu_custom_call.1} parent=27 // pred_check
          %p275 = pneg %p274
        $region38: #{tpu_custom_call.1} parent=27 // pred_check_branch
          %277 = sbr.rel (%p275) target = $region40
        $region39: #{tpu_custom_call.1} parent=27 // pred_region
          %278 = vst [vmem:[%s264] sm:$0xf] 0.0
          %279 = vst [vmem:[%s271] sm:$0xf] 0.0
        $region40: #{tpu_custom_call.1} parent=27 // pred_fallthru
          _
        %v280 = vld [vmem:[%s230] sm:$0x3]
        %v281 = vld [vmem:[%s230 + $0x2] sm:$0x3]
        %v282 = vld [vmem:[%s230 + $0x4] sm:$0x3]
        %v283 = vld [vmem:[%s230 + $0x6] sm:$0x3]
        %v284 = vld [vmem:[%s239] sm:$0x1]
        %v285 = vunpack.c.0.s8 %v284
        %vm286 = vcmask 1041408
        %v287 = vsel %vm286, %v280, -inf
        %v288 = vsel %vm286, %v281, -inf
        %v289 = vsel %vm286, %v282, -inf
        %v290 = vsel %vm286, %v283, -inf
        %v291 = vmax.f32 %v287, %v288
        %v292 = vmax.f32 %v289, %v290
        %v293 = vmax.f32 %v291, %v292
        %v294 = vsub.f32 %v280, %v293
        %v295 = vsub.f32 %v281, %v293
        %v296 = vsub.f32 %v282, %v293
        %v297 = vsub.f32 %v283, %v293
        %v298 = vmul.f32 %v294, 1.442695
        %v299 = vpow.pop %v298
        %v300 = vmul.f32 %v295, 1.442695
        %v301 = vpow.pop %v300
        %v302 = vmul.f32 %v296, 1.442695
        %v303 = vpow.pop %v302
        %v304 = vmul.f32 %v297, 1.442695
        %v305 = vpow.pop %v304
        %v306 = vsel %vm286, %v299, 0.0
        %v307 = vsel %vm286, %v301, 0.0
        %v308 = vadd.f32 %v306, %v307
        %v309 = vsel %vm286, %v303, 0.0
        %v310 = vadd.f32 %v308, %v309
        %v311 = vsel %vm286, %v305, 0.0
        %v312 = vadd.f32 %v310, %v311
        %v313 = vrcp.pop %v312
        %v314 = vmul.f32 %v312, %v313
        %v315 = vsub.f32 2.0, %v314
        %v316 = vmul.f32 %v313, %v315
        %v317 = vmul.f32 %v299, %v316
        %v318 = vmul.f32 %v301, %v316
        %v319 = vmul.f32 %v303, %v316
        %v320 = vmul.f32 %v305, %v316
        %vm321 = vcmp.eq.s32.totalorder %v285, 0
        %vm322 = vcmp.eq.s32.totalorder %v285, 1
        %vm323 = vcmp.eq.s32.totalorder %v285, 2
        %vm324 = vcmp.eq.s32.totalorder %v285, 3
        %v325 = vsel %vm321, 1, 0
        %v326 = vsel %vm322, 1, 0
        %v327 = vsel %vm323, 1, 0
        %v328 = vsel %vm324, 1, 0
        %v329 = vcvt.s32.f32 %v325
        %v330 = vcvt.s32.f32 %v326
        %v331 = vcvt.s32.f32 %v327
        %v332 = vcvt.s32.f32 %v328
        %v333 = vld [vmem:[%s264] sm:$0xf]
        %v334 = vmul.f32 %v317, %v329
        %v335 = vmul.f32 %v318, %v330
        %v336 = vmul.f32 %v319, %v331
        %v337 = vmul.f32 %v320, %v332
        %v338 = vsel %vm286, %v334, 0.0
        %v339 = vrot.slane %v338, 4
        %v340 = vadd.f32 %v338, %v339
        %v341 = vrot.slane %v340, 2
        %v342 = vadd.f32 %v340, %v341
        %v343 = vrot.slane %v342, 1
        %v344 = vadd.f32 %v342, %v343
        %v345 = vsel %vm286, %v335, 0.0
        %v346 = vrot.slane %v345, 4
        %v347 = vadd.f32 %v345, %v346
        %v348 = vrot.slane %v347, 2
        %v349 = vadd.f32 %v347, %v348
        %v350 = vrot.slane %v349, 1
        %v351 = vadd.f32 %v349, %v350
        %v352 = vsel %vm286, %v336, 0.0
        %v353 = vrot.slane %v352, 4
        %v354 = vadd.f32 %v352, %v353
        %v355 = vrot.slane %v354, 2
        %v356 = vadd.f32 %v354, %v355
        %v357 = vrot.slane %v356, 1
        %v358 = vadd.f32 %v356, %v357
        %v359 = vsel %vm286, %v337, 0.0
        %v360 = vrot.slane %v359, 4
        %v361 = vadd.f32 %v359, %v360
        %v362 = vrot.slane %v361, 2
        %v363 = vadd.f32 %v361, %v362
        %v364 = vrot.slane %v363, 1
        %v365 = vadd.f32 %v363, %v364
        %vm370 = vcmask 1041409
        %v371 = vsel %vm370, %v351, %v344
        %vm372 = vcmask 1042434
        %v373 = vsel %vm372, %v358, %v371
        %vm374 = vcmask 1043459
        %v375 = vsel %vm374, %v365, %v373
        %v377 = vadd.f32 %v333, %v375
        %378 = vst [vmem:[%s264] sm:$0xf] %v377
        %v379 = vld [vmem:[%s271] sm:$0xf]
        %v380 = vadd.f32 %v317, %v329
        %v381 = vadd.f32 %v318, %v330
        %v382 = vadd.f32 %v319, %v331
        %v383 = vadd.f32 %v320, %v332
        %v384 = vsel %vm286, %v380, 0.0
        %v385 = vrot.slane %v384, 4
        %v386 = vadd.f32 %v384, %v385
        %v387 = vrot.slane %v386, 2
        %v388 = vadd.f32 %v386, %v387
        %v389 = vrot.slane %v388, 1
        %v390 = vadd.f32 %v388, %v389
        %v391 = vsel %vm286, %v381, 0.0
        %v392 = vrot.slane %v391, 4
        %v393 = vadd.f32 %v391, %v392
        %v394 = vrot.slane %v393, 2
        %v395 = vadd.f32 %v393, %v394
        %v396 = vrot.slane %v395, 1
        %v397 = vadd.f32 %v395, %v396
        %v398 = vsel %vm286, %v382, 0.0
        %v399 = vrot.slane %v398, 4
        %v400 = vadd.f32 %v398, %v399
        %v401 = vrot.slane %v400, 2
        %v402 = vadd.f32 %v400, %v401
        %v403 = vrot.slane %v402, 1
        %v404 = vadd.f32 %v402, %v403
        %v405 = vsel %vm286, %v383, 0.0
        %v406 = vrot.slane %v405, 4
        %v407 = vadd.f32 %v405, %v406
        %v408 = vrot.slane %v407, 2
        %v409 = vadd.f32 %v407, %v408
        %v410 = vrot.slane %v409, 1
        %v411 = vadd.f32 %v409, %v410
        %v416 = vsel %vm370, %v397, %v390
        %v417 = vsel %vm372, %v404, %v416
        %v418 = vsel %vm374, %v411, %v417
        %v420 = vadd.f32 %v379, %v418
        %421 = vst [vmem:[%s271] sm:$0xf] %v420
        %s422 = sand.u32 %s116, 1
        %s423 = scalar_lea.sflag [#allocation4], %s422
        %s424 = sand.u32 %s116, 1
        %s425 = smul.addr %s424, 4
        %s426 = scalar_lea.vmem [#allocation7], %s425
        %s427 = sand.u32 %s144, 1
        %s428 = scalar_lea.sflag [#allocation9], %s427
        %s429 = sand.u32 %s144, 1
        %s430 = smul.addr %s429, 4
        %s431 = scalar_lea.vmem [#allocation8], %s430
        // Predicated region
        $region41: #{tpu_custom_call.1} parent=27 // pred_check
          %p432 = pneg %p126
        $region42: #{tpu_custom_call.1} parent=27 // pred_check_branch
          %434 = sbr.rel (%p432) target = $region44
        $region43: #{tpu_custom_call.1} parent=27 // pred_region
          %436 = vsyncadd %s423, 0
          %s437 = smul.addr %s32, 2
          %s438 = sadd.s32 %s33, %s437
          %s439 = smul.addr %s438, 4
          %s440 = scalar_lea.hbm %s2, %s439
          %s442 = sshll.u32 %s426, 4
          %s443 = int_to_ptr.vmem [resolvable:$true] %s442
          %s444 = sshll.u32 %s440, 4
          %s445 = int_to_ptr.hbm [resolvable:$true] %s444
          %447 = dma.vmem_to_hbm [thread:$0]  %s443, 64, %s445, %s423
        $region44: #{tpu_custom_call.1} parent=27 // pred_fallthru
          _
        // Predicated region
        $region45: #{tpu_custom_call.1} parent=27 // pred_check
          %p448 = pneg %p154
        $region46: #{tpu_custom_call.1} parent=27 // pred_check_branch
          %450 = sbr.rel (%p448) target = $region48
        $region47: #{tpu_custom_call.1} parent=27 // pred_region
          %452 = vsyncadd %s428, 0
          %s453 = smul.addr %s32, 2
          %s454 = sadd.s32 %s33, %s453
          %s455 = smul.addr %s454, 4
          %s456 = scalar_lea.hbm %s3, %s455
          %s458 = sshll.u32 %s431, 4
          %s459 = int_to_ptr.vmem [resolvable:$true] %s458
          %s460 = sshll.u32 %s456, 4
          %s461 = int_to_ptr.hbm [resolvable:$true] %s460
          %463 = dma.vmem_to_hbm [thread:$0]  %s459, 64, %s461, %s428
        $region48: #{tpu_custom_call.1} parent=27 // pred_fallthru
          _
      $region28: #{tpu_custom_call.1} parent=5 // pred_fallthru
        _
      %p464 = scmp.le.s32.totalorder 2, %s22
      // Predicated region
      $region49: #{tpu_custom_call.1} parent=5 // pred_check
        %p465 = pneg %p464
      $region50: #{tpu_custom_call.1} parent=5 // pred_check_branch
        %467 = sbr.rel (%p465) target = $region52
      $region51: #{tpu_custom_call.1} parent=5 // pred_region
        %s468 = ssub.s32 %s22, 2
        // Predicated region
        $region53: #{tpu_custom_call.1} parent=51 // pred_check
          %p469 = pneg %p132
        $region54: #{tpu_custom_call.1} parent=51 // pred_check_branch
          %471 = sbr.rel (%p469) target = $region56
        $region55: #{tpu_custom_call.1} parent=51 // pred_region
          %s472 = sand.u32 %s117, 1
          %s473 = scalar_lea.sflag [#allocation4], %s472
          %s474 = sand.u32 %s117, 1
          %s475 = smul.addr %s474, 4
          %s476 = scalar_lea.vmem [#allocation7], %s475
          %478 = dma.done %s473, 64
        $region56: #{tpu_custom_call.1} parent=51 // pred_fallthru
          _
        // Predicated region
        $region57: #{tpu_custom_call.1} parent=51 // pred_check
          %p479 = pneg %p160
        $region58: #{tpu_custom_call.1} parent=51 // pred_check_branch
          %481 = sbr.rel (%p479) target = $region60
        $region59: #{tpu_custom_call.1} parent=51 // pred_region
          %s482 = sand.u32 %s145, 1
          %s483 = scalar_lea.sflag [#allocation9], %s482
          %s484 = sand.u32 %s145, 1
          %s485 = smul.addr %s484, 4
          %s486 = scalar_lea.vmem [#allocation8], %s485
          %488 = dma.done %s483, 64
        $region60: #{tpu_custom_call.1} parent=51 // pred_fallthru
          _
      $region52: #{tpu_custom_call.1} parent=5 // pred_fallthru
        _
    $region6: #{tpu_custom_call.1} parent=1 // loop_footer
      %s26 = sadd.s32 1, %s22
    $region7: #{tpu_custom_call.1} parent=1 // loop_footer_branch
      %21 = sbr.rel target = $region3
    $region8: #{tpu_custom_call.1} parent=1 // loop_exit
      _
    %489 = vsyncpa [#allocation3], 1
    %s490 = scalar_lea.sflag [#allocation3], 1
    %491 = vsyncpa %s490, 1
    %492 = vsyncpa [#allocation6], 1
    %s493 = scalar_lea.sflag [#allocation6], 1
    %494 = vsyncpa %s493, 1
    %495 = vsyncpa [#allocation4], 1
    %s496 = scalar_lea.sflag [#allocation4], 1
    %497 = vsyncpa %s496, 1
    %498 = vsyncpa [#allocation9], 1
    %s499 = scalar_lea.sflag [#allocation9], 1
    %500 = vsyncpa %s499, 1

</llo_original>
